<compile_context>
chip_gen: v5e
topology: v5e:2x2
jax: 0.10.0
libtpu: 0.0.40
codegen_flags: <defaults>
</compile_context>

<pallas_src>
import math

import jax
import jax.numpy as jnp
from jax.experimental import pallas as pl
from jax.experimental.pallas import tpu as pltpu

LANE = 128
_MAX_OUTSTANDING_DMAS = 4            # outstanding HBM->HBM DMA chunks
_CHUNK_MIN_BYTES = 2 * 1024 * 1024   # don't bother splitting copies below this


def _make_hbm_copy_kernel(row_chunks):
    """Identity copy via direct HBM->HBM DMA (no VMEM staging).

    row_chunks: None -> one full-ref DMA; otherwise a static list of
    (start_row, num_rows) chunks of a (rows, 128) view. All chunk DMAs are
    issued back-to-back (outstanding) and then waited on.
    """

    def kernel(x_hbm, o_hbm, sem):
        copies = []
        if row_chunks is None:
            cp = pltpu.make_async_copy(x_hbm, o_hbm, sem.at[0])
            cp.start()
            copies.append(cp)
        else:
            for i, (start, size) in enumerate(row_chunks):
                cp = pltpu.make_async_copy(
                    x_hbm.at[pl.ds(start, size), :],
                    o_hbm.at[pl.ds(start, size), :],
                    sem.at[i],
                )
                cp.start()
                copies.append(cp)
        for cp in copies:
            cp.wait()

    return kernel


def print_layer(x: jax.Array) -> jax.Array:
    """Pallas equivalent of PrintLayer.forward: print(x.shape); return x."""
    print(x.shape)

    total = math.prod(x.shape) if x.shape else 1
    if total == 0:
        return x  # nothing to copy

    nbytes = total * jnp.dtype(x.dtype).itemsize

    # Free (contiguous) 2D working view: lane-dense (rows, 128) when the
    # element count allows it, otherwise one flat row — a full-ref HBM->HBM
    # DMA is layout agnostic either way.
    if total % LANE == 0:
        work_shape = (total // LANE, LANE)
    else:
        work_shape = (1, total)
    xw = jnp.reshape(x, work_shape)

    # Split big copies into a few outstanding DMAs; chunk boundaries are
    # 8-sublane aligned so each chunk is a contiguous, tile-aligned range.
    row_chunks = None
    if work_shape[1] == LANE and nbytes >= _CHUNK_MIN_BYTES:
        rows = work_shape[0]
        per_chunk = (rows + _MAX_OUTSTANDING_DMAS - 1) // _MAX_OUTSTANDING_DMAS
        per_chunk = ((per_chunk + 7) // 8) * 8
        row_chunks = []
        r = 0
        while r < rows:
            size = min(per_chunk, rows - r)
            row_chunks.append((r, size))
            r += size
    n_dmas = 1 if row_chunks is None else len(row_chunks)

    ow = pl.pallas_call(
        _make_hbm_copy_kernel(row_chunks),
        out_shape=jax.ShapeDtypeStruct(work_shape, x.dtype),
        in_specs=[pl.BlockSpec(memory_space=pl.ANY)],
        out_specs=pl.BlockSpec(memory_space=pl.ANY),
        scratch_shapes=[pltpu.SemaphoreType.DMA((n_dmas,))],
        cost_estimate=pl.CostEstimate(
            flops=0, transcendentals=0, bytes_accessed=2 * nbytes
        ),
    )(xw)

    return jnp.reshape(ow, x.shape)


if __name__ == "__main__":
    key = jax.random.PRNGKey(0)
    k0, k1 = jax.random.split(key)

    # Small NCHW input consistent with a minigrid CNN feature map.
    x = jax.random.normal(k0, (2, 4, 16, 16), dtype=jnp.float32)
    y = jax.block_until_ready(print_layer(x))
    assert y.shape == x.shape and y.dtype == x.dtype
    assert bool(jnp.all(y == x))

    # Non-128-multiple element count exercises the full-ref DMA path.
    x2 = jax.random.normal(k1, (3, 5, 7), dtype=jnp.float32)
    y2 = jax.block_until_ready(print_layer(x2))
    assert y2.shape == x2.shape and y2.dtype == x2.dtype
    assert bool(jnp.all(y2 == x2))

    print("KERNEL_OK")
</pallas_src>

<mosaic_0001>
module attributes {stable_mosaic.version = 11 : i64} {
  func.func @kernel(%arg0: memref<16x128xf32, #tpu.memory_space<any>>, %arg1: memref<16x128xf32, #tpu.memory_space<any>>, %arg2: memref<1x!tpu.dma_semaphore, #tpu.memory_space<semaphore_mem>>) attributes {dimension_semantics = [], scalar_prefetch = 0 : i64, scratch_operands = 1 : i64, tpu.core_type = #tpu.core_type<tc>} {
    %c0_i32 = arith.constant 0 : i32
    %0 = tpu.memref_slice %arg2[%c0_i32] : memref<1x!tpu.dma_semaphore, #tpu.memory_space<semaphore_mem>> -> memref<1x!tpu.dma_semaphore, #tpu.memory_space<semaphore_mem>>
    %1 = tpu.memref_squeeze %0 : memref<1x!tpu.dma_semaphore, #tpu.memory_space<semaphore_mem>> -> memref<!tpu.dma_semaphore, #tpu.memory_space<semaphore_mem>>
    tpu.enqueue_dma source(%arg0 : memref<16x128xf32, #tpu.memory_space<any>>) target(%arg1 : memref<16x128xf32, #tpu.memory_space<any>>) target_semaphore(%1 : memref<!tpu.dma_semaphore, #tpu.memory_space<semaphore_mem>>)
    %c0_i32_0 = arith.constant 0 : i32
    %2 = tpu.memref_slice %arg2[%c0_i32_0] : memref<1x!tpu.dma_semaphore, #tpu.memory_space<semaphore_mem>> -> memref<1x!tpu.dma_semaphore, #tpu.memory_space<semaphore_mem>>
    %3 = tpu.memref_squeeze %2 : memref<1x!tpu.dma_semaphore, #tpu.memory_space<semaphore_mem>> -> memref<!tpu.dma_semaphore, #tpu.memory_space<semaphore_mem>>
    tpu.wait_dma2 semaphore(%3 : memref<!tpu.dma_semaphore, #tpu.memory_space<semaphore_mem>>) src(%arg0 : memref<16x128xf32, #tpu.memory_space<any>>) dst(%arg1 : memref<16x128xf32, #tpu.memory_space<any>>)
    return
  }
}

</mosaic_0001>

<llo_original>
// kernel: tpu_custom_call.1
$region0: #{tpu_custom_call.1}
  #allocation0 [shape = 'u32[]', space=smem, size = 0x4, offset = 0x4, fixed_abs, tag = 'smem constant byte address 0x4 - core index']
  #allocation1 [shape = 'u32[72,128]{1,0:T(1,128)}', space=vmem, size = 0x9000, scoped, tag = 'internal scratch']
  #allocation2 [shape = 's32[1]{0}', space=sflag, size = 0x4, scoped, tag = 'scratch operand']
  #allocation3 [shape = 's32[]', space=sflag, size = 0x4, offset = 0, fixed_abs, tag = 'sflag constant byte address 0x0 - dummy sync flag']
  #allocation4 [shape = 'u32[0]{0}', space=smem, size = 0, offset = 0, fixed_abs, tag = 'smem constant byte address 0x0 - null']
  %s0 = inlined_call_operand.hbm [shape: f32[16,128], index: 0, kind: input, shape index: {}]
  %s1 = inlined_call_operand.hbm [shape: f32[16,128], index: 1, kind: output, shape index: {}]
  %s2 = sld [smem:[#allocation0]]
  $region2: #{tpu_custom_call.1} parent=0
    _
  %s4 = ssub.s32 1, %s2
  %s5 = scalar_select 0, %s4, %s2
  %s7 = sshll.u32 1, 14
  %s8 = sxor.u32 4294967295, %s7
  %s10 = sshll.u32 %s0, 4
  %s11 = int_to_ptr.hbm [resolvable:$true] %s10
  %s12 = sshll.u32 %s1, 4
  %s13 = int_to_ptr.hbm [resolvable:$true] %s12
  %16 = dma.general %s11, 256, %s13, [#allocation2], [#allocation3], [#allocation4], 0, 0
  %s17 = smul.u32 16, 1
  %s18 = sshll.u32 %s17, 4
  %19 = dma.done [#allocation2], %s18
  %20 = vsyncmov [#allocation2]
  %s21 = vpop.sfrf %20
  %p22 = scmp.eq.s32.totalorder %s21, 0
  %p23 = pneg %p22
  %25 = shalt.err (%p23)

</llo_original>
